<compile_context>
chip_gen: v7x
topology: tpu7x:2x2x1
jax: 0.10.0
libtpu: 0.0.40
codegen_flags: <defaults>
</compile_context>

<pallas_src>
import math

import jax
import jax.numpy as jnp
from jax.experimental import pallas as pl
from jax.experimental.pallas import tpu as pltpu

IN_RAW = 784          # 28 * 28 (kept un-padded; full-array last dim in BlockSpec)
H1, H2, H3 = 256, 128, 64
CLS_RAW = 10
CLS_PAD = 128         # lane-dense classifier head (unmasked stores)
NEG_INF = -1e30       # bias for padded class lanes (exp -> 0, never the max)
MAX_TB = 1024         # upper bound for the batch tile (VMEM ~5 MB incl. dbl-buf)


def _round_up(n, m):
    return ((n + m - 1) // m) * m


def _choose_tb(batch, max_tb=MAX_TB):
    """Adaptive batch tile (multiple of 8 for sublane alignment).

    Tiny batches: one small tile (avoid padding B=8 up to 256+ rows).
    Medium batches: exactly two tiles so v7x's 2 TensorCores both get work.
    Large batches: max_tb-sized tiles to amortize per-grid-step overhead.
    """
    b8 = _round_up(batch, 8)
    if b8 <= 64:
        return b8
    if b8 <= 2 * max_tb:
        return _round_up(pl.cdiv(b8, 2), 8)
    return max_tb


def _mlp_kernel(x_ref, w1_ref, b1_ref, w2_ref, b2_ref, w3_ref, b3_ref,
                w4_ref, b4_ref, out_ref):
    """Whole MLP forward for one (tb, 784) batch tile.

    Matmul inputs are bf16, accumulation is f32 on the MXU; BReLU and the
    log_softmax are computed on the f32 accumulator.
    """
    x = x_ref[...]                                                       # (tb, 784) bf16

    h = jnp.dot(x, w1_ref[...], preferred_element_type=jnp.float32) + b1_ref[...]
    h = jnp.clip(h, 0.0, 1.0).astype(jnp.bfloat16)                       # BReLU 1

    h = jnp.dot(h, w2_ref[...], preferred_element_type=jnp.float32) + b2_ref[...]
    h = jnp.clip(h, 0.0, 1.0).astype(jnp.bfloat16)                       # BReLU 2

    h = jnp.dot(h, w3_ref[...], preferred_element_type=jnp.float32) + b3_ref[...]
    h = jnp.clip(h, 0.0, 1.0).astype(jnp.bfloat16)                       # BReLU 3

    logits = jnp.dot(h, w4_ref[...], preferred_element_type=jnp.float32) + b4_ref[...]

    # log_softmax over the 128 padded class lanes. Pad lanes carry a -1e30 bias,
    # so they never win the max and contribute ~0 to the logsumexp -> the first
    # 10 lanes are exactly log_softmax over the real classes.
    m = jnp.max(logits, axis=1, keepdims=True)
    z = logits - m
    lse = jnp.log(jnp.sum(jnp.exp(z), axis=1, keepdims=True))
    out_ref[...] = (z - lse).astype(out_ref.dtype)


def prepare_params(params):
    """Pad + cast params once. Weights are stored (in, out) so the kernel
    computes x @ W + b; real torch.nn.Linear checkpoints ((out, in)) must be
    transposed before calling this."""
    (w1, b1), (w2, b2), (w3, b3), (w4, b4) = params

    def as_row(b):
        return jnp.asarray(b, jnp.float32).reshape(1, -1)

    # Head: zero-pad output columns 10 -> 128; bias pad columns get -1e30.
    w4p = jnp.zeros((H3, CLS_PAD), jnp.float32).at[:, :CLS_RAW].set(w4)
    b4p = jnp.full((1, CLS_PAD), NEG_INF, jnp.float32).at[0, :CLS_RAW].set(
        jnp.asarray(b4, jnp.float32).reshape(-1))

    return (
        (jnp.asarray(w1, jnp.bfloat16), as_row(b1)),
        (jnp.asarray(w2, jnp.bfloat16), as_row(b2)),
        (jnp.asarray(w3, jnp.bfloat16), as_row(b3)),
        (w4p.astype(jnp.bfloat16), b4p),
    )


def classifier_forward(x_nchw, prepared_params, max_tb=MAX_TB):
    """x_nchw: (B, 1, 28, 28) -> (B, 10) log-probabilities (float32)."""
    (w1, b1), (w2, b2), (w3, b3), (w4, b4) = prepared_params

    B = x_nchw.shape[0]
    tb = _choose_tb(B, max_tb)
    Bp = tb * pl.cdiv(B, tb)

    # x.view(B, -1), cast straight to bf16, batch-pad to a multiple of tb.
    x = x_nchw.reshape(B, -1).astype(jnp.bfloat16)       # (B, 784)
    if Bp != B:
        x = jnp.pad(x, ((0, Bp - B), (0, 0)))            # zero rows, sliced off later

    const = lambda i: (0, 0)   # weights/biases resident across all grid steps

    out = pl.pallas_call(
        _mlp_kernel,
        out_shape=jax.ShapeDtypeStruct((Bp, CLS_PAD), jnp.bfloat16),
        grid_spec=pltpu.PrefetchScalarGridSpec(
            num_scalar_prefetch=0,
            grid=(Bp // tb,),
            in_specs=[
                pl.BlockSpec((tb, IN_RAW), lambda i: (i, 0)),   # x tile (784 = full last dim)
                pl.BlockSpec((IN_RAW, H1), const),
                pl.BlockSpec((1, H1), const),
                pl.BlockSpec((H1, H2), const),
                pl.BlockSpec((1, H2), const),
                pl.BlockSpec((H2, H3), const),
                pl.BlockSpec((1, H3), const),
                pl.BlockSpec((H3, CLS_PAD), const),
                pl.BlockSpec((1, CLS_PAD), const),
            ],
            out_specs=pl.BlockSpec((tb, CLS_PAD), lambda i: (i, 0)),
        ),
        compiler_params=pltpu.CompilerParams(
            dimension_semantics=("parallel",),
            vmem_limit_bytes=32 * 1024 * 1024,   # raise v5e's 16 MiB scoped default
        ),
    )(x, w1, b1, w2, b2, w3, b3, w4, b4)

    return out[:B, :CLS_RAW].astype(jnp.float32)


def init_linear(key, fan_in, fan_out):
    """nn.Linear default init: U(-1/sqrt(fan_in), +1/sqrt(fan_in)).
    Weight stored as (fan_in, fan_out) so the kernel computes x @ W + b."""
    kw, kb = jax.random.split(key)
    bound = 1.0 / math.sqrt(fan_in)
    w = jax.random.uniform(kw, (fan_in, fan_out), jnp.float32, -bound, bound)
    b = jax.random.uniform(kb, (fan_out,), jnp.float32, -bound, bound)
    return w, b


def _reference(x_nchw, params):
    """Pure-JAX f32 reference of the PyTorch forward."""
    x = x_nchw.reshape(x_nchw.shape[0], -1)
    (w1, b1), (w2, b2), (w3, b3), (w4, b4) = params
    h = jnp.clip(x @ w1 + b1, 0.0, 1.0)
    h = jnp.clip(h @ w2 + b2, 0.0, 1.0)
    h = jnp.clip(h @ w3 + b3, 0.0, 1.0)
    return jax.nn.log_softmax(h @ w4 + b4, axis=1)


if __name__ == "__main__":
    key = jax.random.PRNGKey(0)
    k_x, k1, k2, k3, k4 = jax.random.split(key, 5)

    # Small MNIST-like input: batch=8, NCHW (8, 1, 28, 28).
    x = jax.random.normal(k_x, (8, 1, 28, 28), jnp.float32)

    params = (
        init_linear(k1, IN_RAW, H1),
        init_linear(k2, H1, H2),
        init_linear(k3, H2, H3),
        init_linear(k4, H3, CLS_RAW),
    )
    prepared = prepare_params(params)

    out = classifier_forward(x, prepared)
    out = jax.block_until_ready(out)

    # Sanity checks (tolerances account for bf16 matmul inputs + bf16 writeback).
    assert out.shape == (8, CLS_RAW)
    row_sums = jnp.sum(jnp.exp(out), axis=1)
    assert bool(jnp.allclose(row_sums, 1.0, atol=1e-2)), row_sums
    ref = _reference(x, params)
    assert bool(jnp.max(jnp.abs(out - ref)) < 5e-2), jnp.max(jnp.abs(out - ref))

    print("KERNEL_OK")
</pallas_src>

<mosaic_0001>
module attributes {stable_mosaic.version = 11 : i64} {
  func.func @_mlp_kernel(%arg0: i32, %arg1: memref<8x784xbf16, #tpu.memory_space<vmem>>, %arg2: memref<784x256xbf16, #tpu.memory_space<vmem>>, %arg3: memref<1x256xf32, #tpu.memory_space<vmem>>, %arg4: memref<256x128xbf16, #tpu.memory_space<vmem>>, %arg5: memref<1x128xf32, #tpu.memory_space<vmem>>, %arg6: memref<128x64xbf16, #tpu.memory_space<vmem>>, %arg7: memref<1x64xf32, #tpu.memory_space<vmem>>, %arg8: memref<64x128xbf16, #tpu.memory_space<vmem>>, %arg9: memref<1x128xf32, #tpu.memory_space<vmem>>, %arg10: memref<8x128xbf16, #tpu.memory_space<vmem>>) attributes {dimension_semantics = [#tpu.dimension_semantics<parallel>], iteration_bounds = array<i64: 1>, scalar_prefetch = 0 : i64, scratch_operands = 0 : i64, tpu.core_type = #tpu.core_type<tc>, window_params = [{transform_indices = @transform_0, window_bounds = array<i64: 8, 784>}, {pipeline_mode = #tpu.pipeline_mode<synchronous>, transform_indices = @transform_1, window_bounds = array<i64: 784, 256>}, {pipeline_mode = #tpu.pipeline_mode<synchronous>, transform_indices = @transform_2, window_bounds = array<i64: 1, 256>}, {pipeline_mode = #tpu.pipeline_mode<synchronous>, transform_indices = @transform_3, window_bounds = array<i64: 256, 128>}, {pipeline_mode = #tpu.pipeline_mode<synchronous>, transform_indices = @transform_4, window_bounds = array<i64: 1, 128>}, {pipeline_mode = #tpu.pipeline_mode<synchronous>, transform_indices = @transform_5, window_bounds = array<i64: 128, 64>}, {pipeline_mode = #tpu.pipeline_mode<synchronous>, transform_indices = @transform_6, window_bounds = array<i64: 1, 64>}, {pipeline_mode = #tpu.pipeline_mode<synchronous>, transform_indices = @transform_7, window_bounds = array<i64: 64, 128>}, {pipeline_mode = #tpu.pipeline_mode<synchronous>, transform_indices = @transform_8, window_bounds = array<i64: 1, 128>}, {transform_indices = @transform_9, window_bounds = array<i64: 8, 128>}]} {
    %c0 = arith.constant 0 : index
    %c0_0 = arith.constant 0 : index
    %0 = vector.load %arg1[%c0, %c0_0] : memref<8x784xbf16, #tpu.memory_space<vmem>>, vector<8x784xbf16>
    %c0_1 = arith.constant 0 : index
    %c0_2 = arith.constant 0 : index
    %1 = vector.load %arg2[%c0_1, %c0_2] : memref<784x256xbf16, #tpu.memory_space<vmem>>, vector<784x256xbf16>
    %cst = arith.constant dense<0.000000e+00> : vector<8x256xf32>
    %2 = tpu.matmul %0, %1, %cst {dimension_numbers = #tpu.dot_dimension_numbers<[1], [0], [0], [1], [0, 0, 1, 1], [], []>} : vector<8x784xbf16>, vector<784x256xbf16>, vector<8x256xf32> -> vector<8x256xf32>
    %c0_3 = arith.constant 0 : index
    %c0_4 = arith.constant 0 : index
    %3 = vector.load %arg3[%c0_3, %c0_4] : memref<1x256xf32, #tpu.memory_space<vmem>>, vector<1x256xf32>
    %4 = vector.broadcast %3 : vector<1x256xf32> to vector<8x256xf32>
    %5 = arith.addf %2, %4 : vector<8x256xf32>
    %cst_5 = arith.constant 0.000000e+00 : f32
    %cst_6 = arith.constant 1.000000e+00 : f32
    %6 = vector.broadcast %cst_5 : f32 to vector<8x256xf32>
    %7 = arith.maximumf %6, %5 : vector<8x256xf32>
    %8 = vector.broadcast %cst_6 : f32 to vector<8x256xf32>
    %9 = arith.minimumf %8, %7 : vector<8x256xf32>
    %10 = arith.truncf %9 : vector<8x256xf32> to vector<8x256xbf16>
    %c0_7 = arith.constant 0 : index
    %c0_8 = arith.constant 0 : index
    %11 = vector.load %arg4[%c0_7, %c0_8] : memref<256x128xbf16, #tpu.memory_space<vmem>>, vector<256x128xbf16>
    %cst_9 = arith.constant dense<0.000000e+00> : vector<8x128xf32>
    %12 = tpu.matmul %10, %11, %cst_9 {dimension_numbers = #tpu.dot_dimension_numbers<[1], [0], [0], [1], [0, 0, 1, 1], [], []>} : vector<8x256xbf16>, vector<256x128xbf16>, vector<8x128xf32> -> vector<8x128xf32>
    %c0_10 = arith.constant 0 : index
    %c0_11 = arith.constant 0 : index
    %13 = vector.load %arg5[%c0_10, %c0_11] : memref<1x128xf32, #tpu.memory_space<vmem>>, vector<1x128xf32>
    %14 = vector.broadcast %13 : vector<1x128xf32> to vector<8x128xf32>
    %15 = arith.addf %12, %14 : vector<8x128xf32>
    %cst_12 = arith.constant 0.000000e+00 : f32
    %cst_13 = arith.constant 1.000000e+00 : f32
    %16 = vector.broadcast %cst_12 : f32 to vector<8x128xf32>
    %17 = arith.maximumf %16, %15 : vector<8x128xf32>
    %18 = vector.broadcast %cst_13 : f32 to vector<8x128xf32>
    %19 = arith.minimumf %18, %17 : vector<8x128xf32>
    %20 = arith.truncf %19 : vector<8x128xf32> to vector<8x128xbf16>
    %c0_14 = arith.constant 0 : index
    %c0_15 = arith.constant 0 : index
    %21 = vector.load %arg6[%c0_14, %c0_15] : memref<128x64xbf16, #tpu.memory_space<vmem>>, vector<128x64xbf16>
    %cst_16 = arith.constant dense<0.000000e+00> : vector<8x64xf32>
    %22 = tpu.matmul %20, %21, %cst_16 {dimension_numbers = #tpu.dot_dimension_numbers<[1], [0], [0], [1], [0, 0, 1, 1], [], []>} : vector<8x128xbf16>, vector<128x64xbf16>, vector<8x64xf32> -> vector<8x64xf32>
    %c0_17 = arith.constant 0 : index
    %c0_18 = arith.constant 0 : index
    %23 = vector.load %arg7[%c0_17, %c0_18] : memref<1x64xf32, #tpu.memory_space<vmem>>, vector<1x64xf32>
    %24 = vector.broadcast %23 : vector<1x64xf32> to vector<8x64xf32>
    %25 = arith.addf %22, %24 : vector<8x64xf32>
    %cst_19 = arith.constant 0.000000e+00 : f32
    %cst_20 = arith.constant 1.000000e+00 : f32
    %26 = vector.broadcast %cst_19 : f32 to vector<8x64xf32>
    %27 = arith.maximumf %26, %25 : vector<8x64xf32>
    %28 = vector.broadcast %cst_20 : f32 to vector<8x64xf32>
    %29 = arith.minimumf %28, %27 : vector<8x64xf32>
    %30 = arith.truncf %29 : vector<8x64xf32> to vector<8x64xbf16>
    %c0_21 = arith.constant 0 : index
    %c0_22 = arith.constant 0 : index
    %31 = vector.load %arg8[%c0_21, %c0_22] : memref<64x128xbf16, #tpu.memory_space<vmem>>, vector<64x128xbf16>
    %cst_23 = arith.constant dense<0.000000e+00> : vector<8x128xf32>
    %32 = tpu.matmul %30, %31, %cst_23 {dimension_numbers = #tpu.dot_dimension_numbers<[1], [0], [0], [1], [0, 0, 1, 1], [], []>} : vector<8x64xbf16>, vector<64x128xbf16>, vector<8x128xf32> -> vector<8x128xf32>
    %c0_24 = arith.constant 0 : index
    %c0_25 = arith.constant 0 : index
    %33 = vector.load %arg9[%c0_24, %c0_25] : memref<1x128xf32, #tpu.memory_space<vmem>>, vector<1x128xf32>
    %34 = vector.broadcast %33 : vector<1x128xf32> to vector<8x128xf32>
    %35 = arith.addf %32, %34 : vector<8x128xf32>
    %cst_26 = arith.constant dense<0xFF800000> : vector<8xf32>
    %36 = vector.multi_reduction <maximumf>, %35, %cst_26 [1] : vector<8x128xf32> to vector<8xf32>
    %37 = vector.shape_cast %36 : vector<8xf32> to vector<8x1xf32>
    %38 = vector.broadcast %37 : vector<8x1xf32> to vector<8x128xf32>
    %39 = arith.subf %35, %38 : vector<8x128xf32>
    %40 = math.exp %39 : vector<8x128xf32>
    %cst_27 = arith.constant dense<0.000000e+00> : vector<8xf32>
    %41 = vector.multi_reduction <add>, %40, %cst_27 [1] : vector<8x128xf32> to vector<8xf32>
    %42 = vector.shape_cast %41 : vector<8xf32> to vector<8x1xf32>
    %43 = math.log %42 : vector<8x1xf32>
    %44 = vector.broadcast %43 : vector<8x1xf32> to vector<8x128xf32>
    %45 = arith.subf %39, %44 : vector<8x128xf32>
    %46 = arith.truncf %45 : vector<8x128xf32> to vector<8x128xbf16>
    %c0_28 = arith.constant 0 : index
    %c0_29 = arith.constant 0 : index
    %47 = vector.load %arg10[%c0_28, %c0_29] : memref<8x128xbf16, #tpu.memory_space<vmem>>, vector<8x128xbf16>
    tpu.vector_store %arg10[%c0_28, %c0_29], %46 {strides = array<i32>} : memref<8x128xbf16, #tpu.memory_space<vmem>>, vector<8x128xbf16>,
    return
  }
  func.func @transform_0(%arg0: i32) -> (i32, i32) {
    %c0_i32 = arith.constant 0 : i32
    %c0_i32_0 = arith.constant 0 : i32
    return %arg0, %c0_i32 : i32, i32
  }
  func.func @transform_1(%arg0: i32) -> (i32, i32) {
    %c0_i32 = arith.constant 0 : i32
    %c0_i32_0 = arith.constant 0 : i32
    %c0_i32_1 = arith.constant 0 : i32
    return %c0_i32, %c0_i32_0 : i32, i32
  }
  func.func @transform_2(%arg0: i32) -> (i32, i32) {
    %c0_i32 = arith.constant 0 : i32
    %c0_i32_0 = arith.constant 0 : i32
    %c0_i32_1 = arith.constant 0 : i32
    return %c0_i32, %c0_i32_0 : i32, i32
  }
  func.func @transform_3(%arg0: i32) -> (i32, i32) {
    %c0_i32 = arith.constant 0 : i32
    %c0_i32_0 = arith.constant 0 : i32
    %c0_i32_1 = arith.constant 0 : i32
    return %c0_i32, %c0_i32_0 : i32, i32
  }
  func.func @transform_4(%arg0: i32) -> (i32, i32) {
    %c0_i32 = arith.constant 0 : i32
    %c0_i32_0 = arith.constant 0 : i32
    %c0_i32_1 = arith.constant 0 : i32
    return %c0_i32, %c0_i32_0 : i32, i32
  }
  func.func @transform_5(%arg0: i32) -> (i32, i32) {
    %c0_i32 = arith.constant 0 : i32
    %c0_i32_0 = arith.constant 0 : i32
    %c0_i32_1 = arith.constant 0 : i32
    return %c0_i32, %c0_i32_0 : i32, i32
  }
  func.func @transform_6(%arg0: i32) -> (i32, i32) {
    %c0_i32 = arith.constant 0 : i32
    %c0_i32_0 = arith.constant 0 : i32
    %c0_i32_1 = arith.constant 0 : i32
    return %c0_i32, %c0_i32_0 : i32, i32
  }
  func.func @transform_7(%arg0: i32) -> (i32, i32) {
    %c0_i32 = arith.constant 0 : i32
    %c0_i32_0 = arith.constant 0 : i32
    %c0_i32_1 = arith.constant 0 : i32
    return %c0_i32, %c0_i32_0 : i32, i32
  }
  func.func @transform_8(%arg0: i32) -> (i32, i32) {
    %c0_i32 = arith.constant 0 : i32
    %c0_i32_0 = arith.constant 0 : i32
    %c0_i32_1 = arith.constant 0 : i32
    return %c0_i32, %c0_i32_0 : i32, i32
  }
  func.func @transform_9(%arg0: i32) -> (i32, i32) {
    %c0_i32 = arith.constant 0 : i32
    %c0_i32_0 = arith.constant 0 : i32
    return %arg0, %c0_i32 : i32, i32
  }
}

</mosaic_0001>

<llo_original>
// kernel: tpu_custom_call.1
$region0: #{tpu_custom_call.1}
  #allocation0 [shape = 'u32[]', space=smem, size = 0x4, offset = 0x4, fixed_abs, tag = 'smem constant byte address 0x4 - core index']
  #allocation1 [shape = 'u32[144,128]{1,0:T(1,128)}', space=vmem, size = 0x12000, scoped, tag = 'internal scratch']
  %s0 = inlined_call_operand.vmem [shape: bf16[8,784], index: 0, kind: input, shape index: {}]
  %s1 = inlined_call_operand.hbm [shape: bf16[784,256], index: 1, kind: input, shape index: {}]
  %s2 = inlined_call_operand.vmem [shape: f32[1,256], index: 2, kind: input, shape index: {}]
  %s3 = inlined_call_operand.hbm [shape: bf16[256,128], index: 3, kind: input, shape index: {}]
  %s4 = inlined_call_operand.vmem [shape: f32[1,128], index: 4, kind: input, shape index: {}]
  %s5 = inlined_call_operand.vmem [shape: bf16[128,64], index: 5, kind: input, shape index: {}]
  %s6 = inlined_call_operand.vmem [shape: f32[1,64], index: 6, kind: input, shape index: {}]
  %s7 = inlined_call_operand.vmem [shape: bf16[64,128], index: 7, kind: input, shape index: {}]
  %s8 = inlined_call_operand.vmem [shape: f32[1,128], index: 8, kind: input, shape index: {}]
  %s9 = inlined_call_operand.hbm [shape: bf16[8,128], index: 9, kind: output, shape index: {}]
  %s10 = sld [smem:[#allocation0]]
  $region54: #{tpu_custom_call.1} parent=0
    _
  %s12 = ssub.s32 1, %s10
  %s13 = scalar_select 0, %s12, %s10
  $region1: #{tpu_custom_call.1} parent=0
    #allocation2 [shape = 'u8[401408]{0}', space=vmem, size = 0x62000, scoped, tag = 'input window, operand 1, single buffered']
    #allocation3 [shape = 's32[1]{0}', space=sflag, size = 0x4, scoped, tag = 'scoped memory for tpu_custom_call.1']
    #allocation4 [shape = 's32[1]{0}', space=sflag, size = 0x4, scoped, tag = 'scoped memory for tpu_custom_call.1']
    #allocation5 [shape = 'u8[65536]{0}', space=vmem, size = 0x10000, scoped, tag = 'input window, operand 3, single buffered']
    #allocation6 [shape = 's32[1]{0}', space=sflag, size = 0x4, scoped, tag = 'scoped memory for tpu_custom_call.1']
    #allocation7 [shape = 'u8[2048]{0}', space=vmem, size = 0x800, scoped, tag = 'output window, operand 0, single buffered']
    %14 = vsyncpa [#allocation3], 0
    %15 = vsyncpa [#allocation6], 0
    %16 = vsyncpa [#allocation4], 0
    // Predicated region
    $region2: #{tpu_custom_call.1} parent=1 // pred_check
      _
    $region3: #{tpu_custom_call.1} parent=1 // pred_check_branch
      %18 = sbr.rel (0) target = $region5
    $region4: #{tpu_custom_call.1} parent=1 // pred_region
      _
    $region5: #{tpu_custom_call.1} parent=1 // pred_fallthru
      _
    // Predicated region
    $region6: #{tpu_custom_call.1} parent=1 // pred_check
      _
    $region7: #{tpu_custom_call.1} parent=1 // pred_check_branch
      %20 = sbr.rel (0) target = $region9
    $region8: #{tpu_custom_call.1} parent=1 // pred_region
      %s22 = ssub.s32 12544, 12544
      %23 = vsyncadd [#allocation3], %s22
      %s24 = sshll.u32 [#allocation2], 4
      %s25 = int_to_ptr.vmem [resolvable:$true] %s24
      %30 = dma.hbm_to_vmem [thread:$0]  %s1, 12544, %s25, [#allocation3], 128, 128, 8
    $region9: #{tpu_custom_call.1} parent=1 // pred_fallthru
      _
    // Predicated region
    $region10: #{tpu_custom_call.1} parent=1 // pred_check
      _
    $region11: #{tpu_custom_call.1} parent=1 // pred_check_branch
      %32 = sbr.rel (0) target = $region13
    $region12: #{tpu_custom_call.1} parent=1 // pred_region
      _
    $region13: #{tpu_custom_call.1} parent=1 // pred_fallthru
      _
    // Predicated region
    $region14: #{tpu_custom_call.1} parent=1 // pred_check
      _
    $region15: #{tpu_custom_call.1} parent=1 // pred_check_branch
      %34 = sbr.rel (0) target = $region17
    $region16: #{tpu_custom_call.1} parent=1 // pred_region
      %s36 = ssub.s32 2048, 2048
      %37 = vsyncadd [#allocation6], %s36
      %s38 = sshll.u32 [#allocation5], 4
      %s39 = int_to_ptr.vmem [resolvable:$true] %s38
      %44 = dma.hbm_to_vmem [thread:$0]  %s3, 2048, %s39, [#allocation6], 64, 64, 4
    $region17: #{tpu_custom_call.1} parent=1 // pred_fallthru
      _
    // Predicated region
    $region18: #{tpu_custom_call.1} parent=1 // pred_check
      _
    $region19: #{tpu_custom_call.1} parent=1 // pred_check_branch
      %46 = sbr.rel (0) target = $region21
    $region20: #{tpu_custom_call.1} parent=1 // pred_region
      _
    $region21: #{tpu_custom_call.1} parent=1 // pred_fallthru
      _
    // Predicated region
    $region22: #{tpu_custom_call.1} parent=1 // pred_check
      _
    $region23: #{tpu_custom_call.1} parent=1 // pred_check_branch
      %48 = sbr.rel (0) target = $region25
    $region24: #{tpu_custom_call.1} parent=1 // pred_region
      _
    $region25: #{tpu_custom_call.1} parent=1 // pred_fallthru
      _
    // Predicated region
    $region26: #{tpu_custom_call.1} parent=1 // pred_check
      _
    $region27: #{tpu_custom_call.1} parent=1 // pred_check_branch
      %50 = sbr.rel (0) target = $region29
    $region28: #{tpu_custom_call.1} parent=1 // pred_region
      _
    $region29: #{tpu_custom_call.1} parent=1 // pred_fallthru
      _
    // Predicated region
    $region30: #{tpu_custom_call.1} parent=1 // pred_check
      _
    $region31: #{tpu_custom_call.1} parent=1 // pred_check_branch
      %52 = sbr.rel (0) target = $region33
    $region32: #{tpu_custom_call.1} parent=1 // pred_region
      _
    $region33: #{tpu_custom_call.1} parent=1 // pred_fallthru
      _
    // Predicated region
    $region34: #{tpu_custom_call.1} parent=1 // pred_check
      _
    $region35: #{tpu_custom_call.1} parent=1 // pred_check_branch
      %54 = sbr.rel (0) target = $region37
    $region36: #{tpu_custom_call.1} parent=1 // pred_region
      _
    $region37: #{tpu_custom_call.1} parent=1 // pred_fallthru
      _
    // Predicated region
    $region38: #{tpu_custom_call.1} parent=1 // pred_check
      _
    $region39: #{tpu_custom_call.1} parent=1 // pred_check_branch
      %56 = sbr.rel (0) target = $region41
    $region40: #{tpu_custom_call.1} parent=1 // pred_region
      %57 = dma.done [#allocation3], 12544
    $region41: #{tpu_custom_call.1} parent=1 // pred_fallthru
      _
    // Predicated region
    $region42: #{tpu_custom_call.1} parent=1 // pred_check
      _
    $region43: #{tpu_custom_call.1} parent=1 // pred_check_branch
      %59 = sbr.rel (0) target = $region45
    $region44: #{tpu_custom_call.1} parent=1 // pred_region
      %60 = dma.done [#allocation6], 2048
    $region45: #{tpu_custom_call.1} parent=1 // pred_fallthru
      _
    %v62 = vld [vmem:[%s0] sm:$0xff]
    %v63 = vld [vmem:[%s0 + $0x8] sm:$0xff]
    %v64 = vld [vmem:[%s0 + $0x10] sm:$0xff]
    %v65 = vld [vmem:[%s0 + $0x18] sm:$0xf]
    %v66 = vld [vmem:[#allocation2] sm:$0xff]
    %v67 = vld [vmem:[#allocation2 + $0x8] sm:$0xff]
    %v68 = vld [vmem:[#allocation2 + $0x10] sm:$0xff]
    %v69 = vld [vmem:[#allocation2 + $0x18] sm:$0xff]
    %v70 = vld [vmem:[#allocation2 + $0x20] sm:$0xff]
    %v71 = vld [vmem:[#allocation2 + $0x28] sm:$0xff]
    %v72 = vld [vmem:[#allocation2 + $0x30] sm:$0xff]
    %v73 = vld [vmem:[#allocation2 + $0x38] sm:$0xff]
    %v74 = vld [vmem:[#allocation2 + $0x40] sm:$0xff]
    %v75 = vld [vmem:[#allocation2 + $0x48] sm:$0xff]
    %v76 = vld [vmem:[#allocation2 + $0x50] sm:$0xff]
    %v77 = vld [vmem:[#allocation2 + $0x58] sm:$0xff]
    %v78 = vld [vmem:[#allocation2 + $0x60] sm:$0xff]
    %v79 = vld [vmem:[#allocation2 + $0x68] sm:$0xff]
    %v80 = vld [vmem:[#allocation2 + $0x70] sm:$0xff]
    %v81 = vld [vmem:[#allocation2 + $0x78] sm:$0xff]
    %v82 = vld [vmem:[#allocation2 + $0x80] sm:$0xff]
    %v83 = vld [vmem:[#allocation2 + $0x88] sm:$0xff]
    %v84 = vld [vmem:[#allocation2 + $0x90] sm:$0xff]
    %v85 = vld [vmem:[#allocation2 + $0x98] sm:$0xff]
    %v86 = vld [vmem:[#allocation2 + $0xa0] sm:$0xff]
    %v87 = vld [vmem:[#allocation2 + $0xa8] sm:$0xff]
    %v88 = vld [vmem:[#allocation2 + $0xb0] sm:$0xff]
    %v89 = vld [vmem:[#allocation2 + $0xb8] sm:$0xff]
    %v90 = vld [vmem:[#allocation2 + $0xc0] sm:$0xff]
    %v91 = vld [vmem:[#allocation2 + $0xc8] sm:$0xff]
    %v92 = vld [vmem:[#allocation2 + $0xd0] sm:$0xff]
    %v93 = vld [vmem:[#allocation2 + $0xd8] sm:$0xff]
    %v94 = vld [vmem:[#allocation2 + $0xe0] sm:$0xff]
    %v95 = vld [vmem:[#allocation2 + $0xe8] sm:$0xff]
    %v96 = vld [vmem:[#allocation2 + $0xf0] sm:$0xff]
    %v97 = vld [vmem:[#allocation2 + $0xf8] sm:$0xff]
    %v98 = vld [vmem:[#allocation2 + $0x100] sm:$0xff]
    %v99 = vld [vmem:[#allocation2 + $0x108] sm:$0xff]
    %v100 = vld [vmem:[#allocation2 + $0x110] sm:$0xff]
    %v101 = vld [vmem:[#allocation2 + $0x118] sm:$0xff]
    %v102 = vld [vmem:[#allocation2 + $0x120] sm:$0xff]
    %v103 = vld [vmem:[#allocation2 + $0x128] sm:$0xff]
    %v104 = vld [vmem:[#allocation2 + $0x130] sm:$0xff]
    %v105 = vld [vmem:[#allocation2 + $0x138] sm:$0xff]
    %v106 = vld [vmem:[#allocation2 + $0x140] sm:$0xff]
    %v107 = vld [vmem:[#allocation2 + $0x148] sm:$0xff]
    %v108 = vld [vmem:[#allocation2 + $0x150] sm:$0xff]
    %v109 = vld [vmem:[#allocation2 + $0x158] sm:$0xff]
    %v110 = vld [vmem:[#allocation2 + $0x160] sm:$0xff]
    %v111 = vld [vmem:[#allocation2 + $0x168] sm:$0xff]
    %v112 = vld [vmem:[#allocation2 + $0x170] sm:$0xff]
    %v113 = vld [vmem:[#allocation2 + $0x178] sm:$0xff]
    %v114 = vld [vmem:[#allocation2 + $0x180] sm:$0xff]
    %v115 = vld [vmem:[#allocation2 + $0x188] sm:$0xff]
    %v116 = vld [vmem:[#allocation2 + $0x190] sm:$0xff]
    %v117 = vld [vmem:[#allocation2 + $0x198] sm:$0xff]
    %v118 = vld [vmem:[#allocation2 + $0x1a0] sm:$0xff]
    %v119 = vld [vmem:[#allocation2 + $0x1a8] sm:$0xff]
    %v120 = vld [vmem:[#allocation2 + $0x1b0] sm:$0xff]
    %v121 = vld [vmem:[#allocation2 + $0x1b8] sm:$0xff]
    %v122 = vld [vmem:[#allocation2 + $0x1c0] sm:$0xff]
    %v123 = vld [vmem:[#allocation2 + $0x1c8] sm:$0xff]
    %v124 = vld [vmem:[#allocation2 + $0x1d0] sm:$0xff]
    %v125 = vld [vmem:[#allocation2 + $0x1d8] sm:$0xff]
    %v126 = vld [vmem:[#allocation2 + $0x1e0] sm:$0xff]
    %v127 = vld [vmem:[#allocation2 + $0x1e8] sm:$0xff]
    %v128 = vld [vmem:[#allocation2 + $0x1f0] sm:$0xff]
    %v129 = vld [vmem:[#allocation2 + $0x1f8] sm:$0xff]
    %v130 = vld [vmem:[#allocation2 + $0x200] sm:$0xff]
    %v131 = vld [vmem:[#allocation2 + $0x208] sm:$0xff]
    %v132 = vld [vmem:[#allocation2 + $0x210] sm:$0xff]
    %v133 = vld [vmem:[#allocation2 + $0x218] sm:$0xff]
    %v134 = vld [vmem:[#allocation2 + $0x220] sm:$0xff]
    %v135 = vld [vmem:[#allocation2 + $0x228] sm:$0xff]
    %v136 = vld [vmem:[#allocation2 + $0x230] sm:$0xff]
    %v137 = vld [vmem:[#allocation2 + $0x238] sm:$0xff]
    %v138 = vld [vmem:[#allocation2 + $0x240] sm:$0xff]
    %v139 = vld [vmem:[#allocation2 + $0x248] sm:$0xff]
    %v140 = vld [vmem:[#allocation2 + $0x250] sm:$0xff]
    %v141 = vld [vmem:[#allocation2 + $0x258] sm:$0xff]
    %v142 = vld [vmem:[#allocation2 + $0x260] sm:$0xff]
    %v143 = vld [vmem:[#allocation2 + $0x268] sm:$0xff]
    %v144 = vld [vmem:[#allocation2 + $0x270] sm:$0xff]
    %v145 = vld [vmem:[#allocation2 + $0x278] sm:$0xff]
    %v146 = vld [vmem:[#allocation2 + $0x280] sm:$0xff]
    %v147 = vld [vmem:[#allocation2 + $0x288] sm:$0xff]
    %v148 = vld [vmem:[#allocation2 + $0x290] sm:$0xff]
    %v149 = vld [vmem:[#allocation2 + $0x298] sm:$0xff]
    %v150 = vld [vmem:[#allocation2 + $0x2a0] sm:$0xff]
    %v151 = vld [vmem:[#allocation2 + $0x2a8] sm:$0xff]
    %v152 = vld [vmem:[#allocation2 + $0x2b0] sm:$0xff]
    %v153 = vld [vmem:[#allocation2 + $0x2b8] sm:$0xff]
    %v154 = vld [vmem:[#allocation2 + $0x2c0] sm:$0xff]
    %v155 = vld [vmem:[#allocation2 + $0x2c8] sm:$0xff]
    %v156 = vld [vmem:[#allocation2 + $0x2d0] sm:$0xff]
    %v157 = vld [vmem:[#allocation2 + $0x2d8] sm:$0xff]
    %v158 = vld [vmem:[#allocation2 + $0x2e0] sm:$0xff]
    %v159 = vld [vmem:[#allocation2 + $0x2e8] sm:$0xff]
    %v160 = vld [vmem:[#allocation2 + $0x2f0] sm:$0xff]
    %v161 = vld [vmem:[#allocation2 + $0x2f8] sm:$0xff]
    %v162 = vld [vmem:[#allocation2 + $0x300] sm:$0xff]
    %v163 = vld [vmem:[#allocation2 + $0x308] sm:$0xff]
    %v164 = vld [vmem:[%s2] sm:$0x3]
    %v166 = vlaneseq
    %v167 = vshrl.u32 %v166, 7
    %v168 = vsub.s32 0, %v167
    %v169 = vrot.slane %v164, %v168
    %v170 = vlaneseq
    %v171 = vshrl.u32 %v170, 7
    %v172 = vsub.s32 1, %v171
    %v173 = vrot.slane %v164, %v172
    %v180 = vunpack.c.l.b16 %v62
    %v181 = vunpack.c.h.b16 %v62
    %v182 = vunpack.c.l.b16 %v63
    %v183 = vunpack.c.h.b16 %v63
    %v184 = vunpack.c.l.b16 %v64
    %v185 = vunpack.c.h.b16 %v64
    %v186 = vunpack.c.l.b16 %v65
    %v187 = vpack.c.b16 %v180, %v180
    %v188 = vpack.c.b16 %v181, %v181
    %v189 = vpack.c.b16 %v182, %v182
    %v190 = vpack.c.b16 %v183, %v183
    %v191 = vpack.c.b16 %v184, %v184
    %v192 = vpack.c.b16 %v185, %v185
    %v193 = vpack.c.b16 %v186, %v186
    %v298 = vunpack.c.l.b16 %v66
    %v299 = vunpack.c.h.b16 %v66
    %v300 = vunpack.c.l.b16 %v67
    %v301 = vunpack.c.h.b16 %v67
    %v302 = vunpack.c.l.b16 %v68
    %v303 = vunpack.c.h.b16 %v68
    %v304 = vunpack.c.l.b16 %v69
    %v305 = vunpack.c.h.b16 %v69
    %v306 = vunpack.c.l.b16 %v70
    %v307 = vunpack.c.h.b16 %v70
    %v308 = vunpack.c.l.b16 %v71
    %v309 = vunpack.c.h.b16 %v71
    %v310 = vunpack.c.l.b16 %v72
    %v311 = vunpack.c.h.b16 %v72
    %v312 = vunpack.c.l.b16 %v73
    %v313 = vunpack.c.h.b16 %v73
    %v314 = vunpack.c.l.b16 %v74
    %v315 = vunpack.c.h.b16 %v74
    %v316 = vunpack.c.l.b16 %v75
    %v317 = vunpack.c.h.b16 %v75
    %v318 = vunpack.c.l.b16 %v76
    %v319 = vunpack.c.h.b16 %v76
    %v320 = vunpack.c.l.b16 %v77
    %v321 = vunpack.c.h.b16 %v77
    %v322 = vunpack.c.l.b16 %v78
    %v323 = vunpack.c.h.b16 %v78
    %v324 = vunpack.c.l.b16 %v79
    %v325 = vunpack.c.h.b16 %v79
    %v326 = vunpack.c.l.b16 %v80
    %v327 = vunpack.c.h.b16 %v80
    %v328 = vunpack.c.l.b16 %v81
    %v329 = vunpack.c.h.b16 %v81
    %v330 = vunpack.c.l.b16 %v82
    %v331 = vunpack.c.h.b16 %v82
    %v332 = vunpack.c.l.b16 %v83
    %v333 = vunpack.c.h.b16 %v83
    %v334 = vunpack.c.l.b16 %v84
    %v335 = vunpack.c.h.b16 %v84
    %v336 = vunpack.c.l.b16 %v85
    %v337 = vunpack.c.h.b16 %v85
    %v338 = vunpack.c.l.b16 %v86
    %v339 = vunpack.c.h.b16 %v86
    %v340 = vunpack.c.l.b16 %v87
    %v341 = vunpack.c.h.b16 %v87
    %v342 = vunpack.c.l.b16 %v88
    %v343 = vunpack.c.h.b16 %v88
    %v344 = vunpack.c.l.b16 %v89
    %v345 = vunpack.c.h.b16 %v89
    %v346 = vunpack.c.l.b16 %v90
    %v347 = vunpack.c.h.b16 %v90
    %v348 = vunpack.c.l.b16 %v91
    %v349 = vunpack.c.h.b16 %v91
    %v350 = vunpack.c.l.b16 %v92
    %v351 = vunpack.c.h.b16 %v92
    %v352 = vunpack.c.l.b16 %v93
    %v353 = vunpack.c.h.b16 %v93
    %v354 = vunpack.c.l.b16 %v94
    %v355 = vunpack.c.h.b16 %v94
    %v356 = vunpack.c.l.b16 %v95
    %v357 = vunpack.c.h.b16 %v95
    %v358 = vunpack.c.l.b16 %v96
    %v359 = vunpack.c.h.b16 %v96
    %v360 = vunpack.c.l.b16 %v97
    %v361 = vunpack.c.h.b16 %v97
    %v362 = vunpack.c.l.b16 %v98
    %v363 = vunpack.c.h.b16 %v98
    %v364 = vunpack.c.l.b16 %v99
    %v365 = vunpack.c.h.b16 %v99
    %v366 = vunpack.c.l.b16 %v100
    %v367 = vunpack.c.h.b16 %v100
    %v368 = vunpack.c.l.b16 %v101
    %v369 = vunpack.c.h.b16 %v101
    %v370 = vunpack.c.l.b16 %v102
    %v371 = vunpack.c.h.b16 %v102
    %v372 = vunpack.c.l.b16 %v103
    %v373 = vunpack.c.h.b16 %v103
    %v374 = vunpack.c.l.b16 %v104
    %v375 = vunpack.c.h.b16 %v104
    %v376 = vunpack.c.l.b16 %v105
    %v377 = vunpack.c.h.b16 %v105
    %v378 = vunpack.c.l.b16 %v106
    %v379 = vunpack.c.h.b16 %v106
    %v380 = vunpack.c.l.b16 %v107
    %v381 = vunpack.c.h.b16 %v107
    %v382 = vunpack.c.l.b16 %v108
    %v383 = vunpack.c.h.b16 %v108
    %v384 = vunpack.c.l.b16 %v109
    %v385 = vunpack.c.h.b16 %v109
    %v386 = vunpack.c.l.b16 %v110
    %v387 = vunpack.c.h.b16 %v110
    %v388 = vunpack.c.l.b16 %v111
    %v389 = vunpack.c.h.b16 %v111
    %v390 = vunpack.c.l.b16 %v112
    %v391 = vunpack.c.h.b16 %v112
    %v392 = vunpack.c.l.b16 %v113
    %v393 = vunpack.c.h.b16 %v113
    %v394 = vunpack.c.l.b16 %v114
    %v395 = vunpack.c.h.b16 %v114
    %v396 = vunpack.c.l.b16 %v115
    %v397 = vunpack.c.h.b16 %v115
    %v398 = vunpack.c.l.b16 %v116
    %v399 = vunpack.c.h.b16 %v116
    %v400 = vunpack.c.l.b16 %v117
    %v401 = vunpack.c.h.b16 %v117
    %v402 = vunpack.c.l.b16 %v118
    %v403 = vunpack.c.h.b16 %v118
    %v404 = vunpack.c.l.b16 %v119
    %v405 = vunpack.c.h.b16 %v119
    %v406 = vunpack.c.l.b16 %v120
    %v407 = vunpack.c.h.b16 %v120
    %v408 = vunpack.c.l.b16 %v121
    %v409 = vunpack.c.h.b16 %v121
    %v410 = vunpack.c.l.b16 %v122
    %v411 = vunpack.c.h.b16 %v122
    %v412 = vunpack.c.l.b16 %v123
    %v413 = vunpack.c.h.b16 %v123
    %v414 = vunpack.c.l.b16 %v124
    %v415 = vunpack.c.h.b16 %v124
    %v416 = vunpack.c.l.b16 %v125
    %v417 = vunpack.c.h.b16 %v125
    %v418 = vunpack.c.l.b16 %v126
    %v419 = vunpack.c.h.b16 %v126
    %v420 = vunpack.c.l.b16 %v127
    %v421 = vunpack.c.h.b16 %v127
    %v422 = vunpack.c.l.b16 %v128
    %v423 = vunpack.c.h.b16 %v128
    %v424 = vunpack.c.l.b16 %v129
    %v425 = vunpack.c.h.b16 %v129
    %v426 = vunpack.c.l.b16 %v130
    %v427 = vunpack.c.h.b16 %v130
    %v428 = vunpack.c.l.b16 %v131
    %v429 = vunpack.c.h.b16 %v131
    %v430 = vunpack.c.l.b16 %v132
    %v431 = vunpack.c.h.b16 %v132
    %v432 = vunpack.c.l.b16 %v133
    %v433 = vunpack.c.h.b16 %v133
    %v434 = vunpack.c.l.b16 %v134
    %v435 = vunpack.c.h.b16 %v134
    %v436 = vunpack.c.l.b16 %v135
    %v437 = vunpack.c.h.b16 %v135
    %v438 = vunpack.c.l.b16 %v136
    %v439 = vunpack.c.h.b16 %v136
    %v440 = vunpack.c.l.b16 %v137
    %v441 = vunpack.c.h.b16 %v137
    %v442 = vunpack.c.l.b16 %v138
    %v443 = vunpack.c.h.b16 %v138
    %v444 = vunpack.c.l.b16 %v139
    %v445 = vunpack.c.h.b16 %v139
    %v446 = vunpack.c.l.b16 %v140
    %v447 = vunpack.c.h.b16 %v140
    %v448 = vunpack.c.l.b16 %v141
    %v449 = vunpack.c.h.b16 %v141
    %v450 = vunpack.c.l.b16 %v142
    %v451 = vunpack.c.h.b16 %v142
    %v452 = vunpack.c.l.b16 %v143
    %v453 = vunpack.c.h.b16 %v143
    %v454 = vunpack.c.l.b16 %v144
    %v455 = vunpack.c.h.b16 %v144
    %v456 = vunpack.c.l.b16 %v145
    %v457 = vunpack.c.h.b16 %v145
    %v458 = vunpack.c.l.b16 %v146
    %v459 = vunpack.c.h.b16 %v146
    %v460 = vunpack.c.l.b16 %v147
    %v461 = vunpack.c.h.b16 %v147
    %v462 = vunpack.c.l.b16 %v148
    %v463 = vunpack.c.h.b16 %v148
    %v464 = vunpack.c.l.b16 %v149
    %v465 = vunpack.c.h.b16 %v149
    %v466 = vunpack.c.l.b16 %v150
    %v467 = vunpack.c.h.b16 %v150
    %v468 = vunpack.c.l.b16 %v151
    %v469 = vunpack.c.h.b16 %v151
    %v470 = vunpack.c.l.b16 %v152
    %v471 = vunpack.c.h.b16 %v152
    %v472 = vunpack.c.l.b16 %v153
    %v473 = vunpack.c.h.b16 %v153
    %v474 = vunpack.c.l.b16 %v154
    %v475 = vunpack.c.h.b16 %v154
    %v476 = vunpack.c.l.b16 %v155
    %v477 = vunpack.c.h.b16 %v155
    %v478 = vunpack.c.l.b16 %v156
    %v479 = vunpack.c.h.b16 %v156
    %v480 = vunpack.c.l.b16 %v157
    %v481 = vunpack.c.h.b16 %v157
    %v482 = vunpack.c.l.b16 %v158
    %v483 = vunpack.c.h.b16 %v158
    %v484 = vunpack.c.l.b16 %v159
    %v485 = vunpack.c.h.b16 %v159
    %v486 = vunpack.c.l.b16 %v160
    %v487 = vunpack.c.h.b16 %v160
    %v488 = vunpack.c.l.b16 %v161
    %v489 = vunpack.c.h.b16 %v161
    %v490 = vunpack.c.l.b16 %v162
    %v491 = vunpack.c.h.b16 %v162
    %v492 = vunpack.c.l.b16 %v163
    %v493 = vunpack.c.h.b16 %v163
    %v494 = vpack.c.b16 %v300, %v298
    %v495 = vpack.c.b16 %v301, %v299
    %v496 = vpack.c.b16 %v304, %v302
    %v497 = vpack.c.b16 %v305, %v303
    %v498 = vpack.c.b16 %v308, %v306
    %v499 = vpack.c.b16 %v309, %v307
    %v500 = vpack.c.b16 %v312, %v310
    %v501 = vpack.c.b16 %v313, %v311
    %v502 = vpack.c.b16 %v316, %v314
    %v503 = vpack.c.b16 %v317, %v315
    %v504 = vpack.c.b16 %v320, %v318
    %v505 = vpack.c.b16 %v321, %v319
    %v506 = vpack.c.b16 %v324, %v322
    %v507 = vpack.c.b16 %v325, %v323
    %v508 = vpack.c.b16 %v328, %v326
    %v509 = vpack.c.b16 %v329, %v327
    %v510 = vpack.c.b16 %v332, %v330
    %v511 = vpack.c.b16 %v333, %v331
    %v512 = vpack.c.b16 %v336, %v334
    %v513 = vpack.c.b16 %v337, %v335
    %v514 = vpack.c.b16 %v340, %v338
    %v515 = vpack.c.b16 %v341, %v339
    %v516 = vpack.c.b16 %v344, %v342
    %v517 = vpack.c.b16 %v345, %v343
    %v518 = vpack.c.b16 %v348, %v346
    %v519 = vpack.c.b16 %v349, %v347
    %v520 = vpack.c.b16 %v352, %v350
    %v521 = vpack.c.b16 %v353, %v351
    %v522 = vpack.c.b16 %v356, %v354
    %v523 = vpack.c.b16 %v357, %v355
    %v524 = vpack.c.b16 %v360, %v358
    %v525 = vpack.c.b16 %v361, %v359
    %v526 = vpack.c.b16 %v364, %v362
    %v527 = vpack.c.b16 %v365, %v363
    %v528 = vpack.c.b16 %v368, %v366
    %v529 = vpack.c.b16 %v369, %v367
    %v530 = vpack.c.b16 %v372, %v370
    %v531 = vpack.c.b16 %v373, %v371
    %v532 = vpack.c.b16 %v376, %v374
    %v533 = vpack.c.b16 %v377, %v375
    %v534 = vpack.c.b16 %v380, %v378
    %v535 = vpack.c.b16 %v381, %v379
    %v536 = vpack.c.b16 %v384, %v382
    %v537 = vpack.c.b16 %v385, %v383
    %v538 = vpack.c.b16 %v388, %v386
    %v539 = vpack.c.b16 %v389, %v387
    %v540 = vpack.c.b16 %v392, %v390
    %v541 = vpack.c.b16 %v393, %v391
    %v542 = vpack.c.b16 %v396, %v394
    %v543 = vpack.c.b16 %v397, %v395
    %v544 = vpack.c.b16 %v400, %v398
    %v545 = vpack.c.b16 %v401, %v399
    %v546 = vpack.c.b16 %v404, %v402
    %v547 = vpack.c.b16 %v405, %v403
    %v548 = vpack.c.b16 %v408, %v406
    %v549 = vpack.c.b16 %v409, %v407
    %v550 = vpack.c.b16 %v412, %v410
    %v551 = vpack.c.b16 %v413, %v411
    %v552 = vpack.c.b16 %v416, %v414
    %v553 = vpack.c.b16 %v417, %v415
    %v554 = vpack.c.b16 %v420, %v418
    %v555 = vpack.c.b16 %v421, %v419
    %v556 = vpack.c.b16 %v424, %v422
    %v557 = vpack.c.b16 %v425, %v423
    %v558 = vpack.c.b16 %v428, %v426
    %v559 = vpack.c.b16 %v429, %v427
    %v560 = vpack.c.b16 %v432, %v430
    %v561 = vpack.c.b16 %v433, %v431
    %v562 = vpack.c.b16 %v436, %v434
    %v563 = vpack.c.b16 %v437, %v435
    %v564 = vpack.c.b16 %v440, %v438
    %v565 = vpack.c.b16 %v441, %v439
    %v566 = vpack.c.b16 %v444, %v442
    %v567 = vpack.c.b16 %v445, %v443
    %v568 = vpack.c.b16 %v448, %v446
    %v569 = vpack.c.b16 %v449, %v447
    %v570 = vpack.c.b16 %v452, %v450
    %v571 = vpack.c.b16 %v453, %v451
    %v572 = vpack.c.b16 %v456, %v454
    %v573 = vpack.c.b16 %v457, %v455
    %v574 = vpack.c.b16 %v460, %v458
    %v575 = vpack.c.b16 %v461, %v459
    %v576 = vpack.c.b16 %v464, %v462
    %v577 = vpack.c.b16 %v465, %v463
    %v578 = vpack.c.b16 %v468, %v466
    %v579 = vpack.c.b16 %v469, %v467
    %v580 = vpack.c.b16 %v472, %v470
    %v581 = vpack.c.b16 %v473, %v471
    %v582 = vpack.c.b16 %v476, %v474
    %v583 = vpack.c.b16 %v477, %v475
    %v584 = vpack.c.b16 %v480, %v478
    %v585 = vpack.c.b16 %v481, %v479
    %v586 = vpack.c.b16 %v484, %v482
    %v587 = vpack.c.b16 %v485, %v483
    %v588 = vpack.c.b16 %v488, %v486
    %v589 = vpack.c.b16 %v489, %v487
    %v590 = vpack.c.b16 %v492, %v490
    %v591 = vpack.c.b16 %v493, %v491
    %vm690 = vcmask 130048
    %v692 = vsel %vm690, %v193, 0
    %694 = vmatprep.subr.bf16.mxu0 %v495
    %695 = vmatpush1.bf16.msra.mxu0 %v494
    %696 = vmatprep.subr.bf16.mxu0 %v497
    %697 = vmatpush1.bf16.msra.mxu0 %v496
    %698 = vmatprep.subr.bf16.mxu0 %v499
    %699 = vmatpush1.bf16.msra.mxu0 %v498
    %700 = vmatprep.subr.bf16.mxu0 %v501
    %701 = vmatpush1.bf16.msra.mxu0 %v500
    %702 = vmatprep.subr.bf16.mxu0 %v503
    %703 = vmatpush1.bf16.msra.mxu0 %v502
    %704 = vmatprep.subr.bf16.mxu0 %v505
    %705 = vmatpush1.bf16.msra.mxu0 %v504
    %706 = vmatprep.subr.bf16.mxu0 %v507
    %707 = vmatpush1.bf16.msra.mxu0 %v506
    %708 = vmatprep.subr.bf16.mxu0 %v509
    %709 = vmatpush1.bf16.msra.mxu0 %v508
    %710 = vmatprep.subr.bf16.mxu0 %v511
    %711 = vmatpush1.bf16.msra.mxu0 %v510
    %712 = vmatprep.subr.bf16.mxu0 %v513
    %713 = vmatpush1.bf16.msra.mxu0 %v512
    %714 = vmatprep.subr.bf16.mxu0 %v515
    %715 = vmatpush1.bf16.msra.mxu0 %v514
    %716 = vmatprep.subr.bf16.mxu0 %v517
    %717 = vmatpush1.bf16.msra.mxu0 %v516
    %718 = vmatprep.subr.bf16.mxu0 %v519
    %719 = vmatpush1.bf16.msra.mxu0 %v518
    %720 = vmatprep.subr.bf16.mxu0 %v521
    %721 = vmatpush1.bf16.msra.mxu0 %v520
    %722 = vmatprep.subr.bf16.mxu0 %v523
    %723 = vmatpush1.bf16.msra.mxu0 %v522
    %724 = vmatprep.subr.bf16.mxu0 %v525
    %725 = vmatpush1.bf16.msra.mxu0 %v524
    %726 = vmatprep.mubr.bf16.mxu0 %v188
    %727 = vmatmul.mubr.bf16.gmra.mrb[0].mxu0 %v187
    %v728 = vpop.f32.mrb[0].mxu0
    %v729 = vadd.f32 %v169, %v728
    %v730 = vpop.f32.mrb[0].mxu0
    %v731 = vadd.f32 %v173, %v730
    %v732 = vpop.f32.mrb[0].mxu0
    %v733 = vpop.f32.mrb[0].mxu0
    %734 = vdwg.mxu0
    %735 = vmatprep.subr.bf16.mxu0 %v527
    %736 = vmatpush1.bf16.msra.mxu0 %v526
    %737 = vmatprep.subr.bf16.mxu0 %v529
    %738 = vmatpush1.bf16.msra.mxu0 %v528
    %739 = vmatprep.subr.bf16.mxu0 %v531
    %740 = vmatpush1.bf16.msra.mxu0 %v530
    %741 = vmatprep.subr.bf16.mxu0 %v533
    %742 = vmatpush1.bf16.msra.mxu0 %v532
    %743 = vmatprep.subr.bf16.mxu0 %v535
    %744 = vmatpush1.bf16.msra.mxu0 %v534
    %745 = vmatprep.subr.bf16.mxu0 %v537
    %746 = vmatpush1.bf16.msra.mxu0 %v536
    %747 = vmatprep.subr.bf16.mxu0 %v539
    %748 = vmatpush1.bf16.msra.mxu0 %v538
    %749 = vmatprep.subr.bf16.mxu0 %v541
    %750 = vmatpush1.bf16.msra.mxu0 %v540
    %751 = vmatprep.subr.bf16.mxu0 %v543
    %752 = vmatpush1.bf16.msra.mxu0 %v542
    %753 = vmatprep.subr.bf16.mxu0 %v545
    %754 = vmatpush1.bf16.msra.mxu0 %v544
    %755 = vmatprep.subr.bf16.mxu0 %v547
    %756 = vmatpush1.bf16.msra.mxu0 %v546
    %757 = vmatprep.subr.bf16.mxu0 %v549
    %758 = vmatpush1.bf16.msra.mxu0 %v548
    %759 = vmatprep.subr.bf16.mxu0 %v551
    %760 = vmatpush1.bf16.msra.mxu0 %v550
    %761 = vmatprep.subr.bf16.mxu0 %v553
    %762 = vmatpush1.bf16.msra.mxu0 %v552
    %763 = vmatprep.subr.bf16.mxu0 %v555
    %764 = vmatpush1.bf16.msra.mxu0 %v554
    %765 = vmatprep.subr.bf16.mxu0 %v557
    %766 = vmatpush1.bf16.msra.mxu0 %v556
    %767 = vmatprep.mubr.bf16.mxu0 %v190
    %768 = vmatmul.mubr.bf16.gmra.mrb[0].mxu0 %v189
    %v769 = vpop.f32.mrb[0].mxu0
    %v770 = vadd.f32 %v729, %v769
    %v771 = vpop.f32.mrb[0].mxu0
    %v772 = vadd.f32 %v731, %v771
    %v773 = vpop.f32.mrb[0].mxu0
    %v774 = vpop.f32.mrb[0].mxu0
    %775 = vdwg.mxu0
    %776 = vmatprep.subr.bf16.mxu0 %v559
    %777 = vmatpush1.bf16.msra.mxu0 %v558
    %778 = vmatprep.subr.bf16.mxu0 %v561
    %779 = vmatpush1.bf16.msra.mxu0 %v560
    %780 = vmatprep.subr.bf16.mxu0 %v563
    %781 = vmatpush1.bf16.msra.mxu0 %v562
    %782 = vmatprep.subr.bf16.mxu0 %v565
    %783 = vmatpush1.bf16.msra.mxu0 %v564
    %784 = vmatprep.subr.bf16.mxu0 %v567
    %785 = vmatpush1.bf16.msra.mxu0 %v566
    %786 = vmatprep.subr.bf16.mxu0 %v569
    %787 = vmatpush1.bf16.msra.mxu0 %v568
    %788 = vmatprep.subr.bf16.mxu0 %v571
    %789 = vmatpush1.bf16.msra.mxu0 %v570
    %790 = vmatprep.subr.bf16.mxu0 %v573
    %791 = vmatpush1.bf16.msra.mxu0 %v572
    %792 = vmatprep.subr.bf16.mxu0 %v575
    %793 = vmatpush1.bf16.msra.mxu0 %v574
    %794 = vmatprep.subr.bf16.mxu0 %v577
    %795 = vmatpush1.bf16.msra.mxu0 %v576
    %796 = vmatprep.subr.bf16.mxu0 %v579
    %797 = vmatpush1.bf16.msra.mxu0 %v578
    %798 = vmatprep.subr.bf16.mxu0 %v581
    %799 = vmatpush1.bf16.msra.mxu0 %v580
    %800 = vmatprep.subr.bf16.mxu0 %v583
    %801 = vmatpush1.bf16.msra.mxu0 %v582
    %802 = vmatprep.subr.bf16.mxu0 %v585
    %803 = vmatpush1.bf16.msra.mxu0 %v584
    %804 = vmatprep.subr.bf16.mxu0 %v587
    %805 = vmatpush1.bf16.msra.mxu0 %v586
    %806 = vmatprep.subr.bf16.mxu0 %v589
    %807 = vmatpush1.bf16.msra.mxu0 %v588
    %808 = vmatprep.mubr.bf16.mxu0 %v192
    %809 = vmatmul.mubr.bf16.gmra.mrb[0].mxu0 %v191
    %v810 = vpop.f32.mrb[0].mxu0
    %v811 = vadd.f32 %v770, %v810
    %v812 = vpop.f32.mrb[0].mxu0
    %v813 = vadd.f32 %v772, %v812
    %v814 = vpop.f32.mrb[0].mxu0
    %v815 = vpop.f32.mrb[0].mxu0
    %816 = vdwg.mxu0
    %817 = vmatprep.subr.bf16.mxu0 %v591
    %818 = vmatpush1.bf16.msra.mxu0 %v590
    %819 = vmatprep.subr.bf16.mxu0 0
    %820 = vmatpush1.bf16.msra.mxu0 0
    %821 = vmatprep.subr.bf16.mxu0 0
    %822 = vmatpush1.bf16.msra.mxu0 0
    %823 = vmatprep.subr.bf16.mxu0 0
    %824 = vmatpush1.bf16.msra.mxu0 0
    %825 = vmatprep.subr.bf16.mxu0 0
    %826 = vmatpush1.bf16.msra.mxu0 0
    %827 = vmatprep.subr.bf16.mxu0 0
    %828 = vmatpush1.bf16.msra.mxu0 0
    %829 = vmatprep.subr.bf16.mxu0 0
    %830 = vmatpush1.bf16.msra.mxu0 0
    %831 = vmatprep.subr.bf16.mxu0 0
    %832 = vmatpush1.bf16.msra.mxu0 0
    %833 = vmatprep.subr.bf16.mxu0 0
    %834 = vmatpush1.bf16.msra.mxu0 0
    %835 = vmatprep.subr.bf16.mxu0 0
    %836 = vmatpush1.bf16.msra.mxu0 0
    %837 = vmatprep.subr.bf16.mxu0 0
    %838 = vmatpush1.bf16.msra.mxu0 0
    %839 = vmatprep.subr.bf16.mxu0 0
    %840 = vmatpush1.bf16.msra.mxu0 0
    %841 = vmatprep.subr.bf16.mxu0 0
    %842 = vmatpush1.bf16.msra.mxu0 0
    %843 = vmatprep.subr.bf16.mxu0 0
    %844 = vmatpush1.bf16.msra.mxu0 0
    %845 = vmatprep.subr.bf16.mxu0 0
    %846 = vmatpush1.bf16.msra.mxu0 0
    %847 = vmatprep.subr.bf16.mxu0 0
    %848 = vmatpush1.bf16.msra.mxu0 0
    %849 = vmatprep.mubr.bf16.mxu0 0
    %850 = vmatmul.mubr.bf16.gmra.mrb[0].mxu0 %v692
    %v851 = vpop.f32.mrb[0].mxu0
    %v852 = vadd.f32 %v811, %v851
    %v853 = vpop.f32.mrb[0].mxu0
    %v854 = vadd.f32 %v813, %v853
    %v855 = vpop.f32.mrb[0].mxu0
    %v856 = vpop.f32.mrb[0].mxu0
    %857 = vdwg.mxu0
    %v858 = vmax.f32 %v852, 0.0
    %v859 = vmax.f32 %v854, 0.0
    %v860 = vmin.f32 %v858, 1.0
    %v861 = vmin.f32 %v859, 1.0
    %v862 = vpack.c.bf16 %v860, %v860
    %v863 = vpack.c.bf16 %v861, %v861
    %v864 = vld [vmem:[#allocation5] sm:$0xf]
    %v865 = vld [vmem:[#allocation5 + $0x4] sm:$0xf]
    %v866 = vld [vmem:[#allocation5 + $0x8] sm:$0xf]
    %v867 = vld [vmem:[#allocation5 + $0xc] sm:$0xf]
    %v868 = vld [vmem:[#allocation5 + $0x10] sm:$0xf]
    %v869 = vld [vmem:[#allocation5 + $0x14] sm:$0xf]
    %v870 = vld [vmem:[#allocation5 + $0x18] sm:$0xf]
    %v871 = vld [vmem:[#allocation5 + $0x1c] sm:$0xf]
    %v872 = vld [vmem:[#allocation5 + $0x20] sm:$0xf]
    %v873 = vld [vmem:[#allocation5 + $0x24] sm:$0xf]
    %v874 = vld [vmem:[#allocation5 + $0x28] sm:$0xf]
    %v875 = vld [vmem:[#allocation5 + $0x2c] sm:$0xf]
    %v876 = vld [vmem:[#allocation5 + $0x30] sm:$0xf]
    %v877 = vld [vmem:[#allocation5 + $0x34] sm:$0xf]
    %v878 = vld [vmem:[#allocation5 + $0x38] sm:$0xf]
    %v879 = vld [vmem:[#allocation5 + $0x3c] sm:$0xf]
    %v880 = vld [vmem:[#allocation5 + $0x40] sm:$0xf]
    %v881 = vld [vmem:[#allocation5 + $0x44] sm:$0xf]
    %v882 = vld [vmem:[#allocation5 + $0x48] sm:$0xf]
    %v883 = vld [vmem:[#allocation5 + $0x4c] sm:$0xf]
    %v884 = vld [vmem:[#allocation5 + $0x50] sm:$0xf]
    %v885 = vld [vmem:[#allocation5 + $0x54] sm:$0xf]
    %v886 = vld [vmem:[#allocation5 + $0x58] sm:$0xf]
    %v887 = vld [vmem:[#allocation5 + $0x5c] sm:$0xf]
    %v888 = vld [vmem:[#allocation5 + $0x60] sm:$0xf]
    %v889 = vld [vmem:[#allocation5 + $0x64] sm:$0xf]
    %v890 = vld [vmem:[#allocation5 + $0x68] sm:$0xf]
    %v891 = vld [vmem:[#allocation5 + $0x6c] sm:$0xf]
    %v892 = vld [vmem:[#allocation5 + $0x70] sm:$0xf]
    %v893 = vld [vmem:[#allocation5 + $0x74] sm:$0xf]
    %v894 = vld [vmem:[#allocation5 + $0x78] sm:$0xf]
    %v895 = vld [vmem:[#allocation5 + $0x7c] sm:$0xf]
    %v896 = vld [vmem:[%s4] sm:$0x1]
    %v898 = vlaneseq
    %v899 = vshrl.u32 %v898, 7
    %v900 = vsub.s32 0, %v899
    %v901 = vrot.slane %v896, %v900
    %v935 = vunpack.c.l.b16 %v864
    %v936 = vunpack.c.l.b16 %v865
    %v937 = vunpack.c.l.b16 %v866
    %v938 = vunpack.c.l.b16 %v867
    %v939 = vunpack.c.l.b16 %v868
    %v940 = vunpack.c.l.b16 %v869
    %v941 = vunpack.c.l.b16 %v870
    %v942 = vunpack.c.l.b16 %v871
    %v943 = vunpack.c.l.b16 %v872
    %v944 = vunpack.c.l.b16 %v873
    %v945 = vunpack.c.l.b16 %v874
    %v946 = vunpack.c.l.b16 %v875
    %v947 = vunpack.c.l.b16 %v876
    %v948 = vunpack.c.l.b16 %v877
    %v949 = vunpack.c.l.b16 %v878
    %v950 = vunpack.c.l.b16 %v879
    %v951 = vunpack.c.l.b16 %v880
    %v952 = vunpack.c.l.b16 %v881
    %v953 = vunpack.c.l.b16 %v882
    %v954 = vunpack.c.l.b16 %v883
    %v955 = vunpack.c.l.b16 %v884
    %v956 = vunpack.c.l.b16 %v885
    %v957 = vunpack.c.l.b16 %v886
    %v958 = vunpack.c.l.b16 %v887
    %v959 = vunpack.c.l.b16 %v888
    %v960 = vunpack.c.l.b16 %v889
    %v961 = vunpack.c.l.b16 %v890
    %v962 = vunpack.c.l.b16 %v891
    %v963 = vunpack.c.l.b16 %v892
    %v964 = vunpack.c.l.b16 %v893
    %v965 = vunpack.c.l.b16 %v894
    %v966 = vunpack.c.l.b16 %v895
    %v967 = vpack.c.b16 %v936, %v935
    %v968 = vpack.c.b16 %v938, %v937
    %v969 = vpack.c.b16 %v940, %v939
    %v970 = vpack.c.b16 %v942, %v941
    %v971 = vpack.c.b16 %v944, %v943
    %v972 = vpack.c.b16 %v946, %v945
    %v973 = vpack.c.b16 %v948, %v947
    %v974 = vpack.c.b16 %v950, %v949
    %v975 = vpack.c.b16 %v952, %v951
    %v976 = vpack.c.b16 %v954, %v953
    %v977 = vpack.c.b16 %v956, %v955
    %v978 = vpack.c.b16 %v958, %v957
    %v979 = vpack.c.b16 %v960, %v959
    %v980 = vpack.c.b16 %v962, %v961
    %v981 = vpack.c.b16 %v964, %v963
    %v982 = vpack.c.b16 %v966, %v965
    %999 = vmatprep.subr.bf16.mxu0 0
    %1000 = vmatpush1.bf16.msra.mxu0 %v967
    %1001 = vmatprep.subr.bf16.mxu0 0
    %1002 = vmatpush1.bf16.msra.mxu0 %v968
    %1003 = vmatprep.subr.bf16.mxu0 0
    %1004 = vmatpush1.bf16.msra.mxu0 %v969
    %1005 = vmatprep.subr.bf16.mxu0 0
    %1006 = vmatpush1.bf16.msra.mxu0 %v970
    %1007 = vmatprep.subr.bf16.mxu0 0
    %1008 = vmatpush1.bf16.msra.mxu0 %v971
    %1009 = vmatprep.subr.bf16.mxu0 0
    %1010 = vmatpush1.bf16.msra.mxu0 %v972
    %1011 = vmatprep.subr.bf16.mxu0 0
    %1012 = vmatpush1.bf16.msra.mxu0 %v973
    %1013 = vmatprep.subr.bf16.mxu0 0
    %1014 = vmatpush1.bf16.msra.mxu0 %v974
    %1015 = vmatprep.subr.bf16.mxu0 0
    %1016 = vmatpush1.bf16.msra.mxu0 %v975
    %1017 = vmatprep.subr.bf16.mxu0 0
    %1018 = vmatpush1.bf16.msra.mxu0 %v976
    %1019 = vmatprep.subr.bf16.mxu0 0
    %1020 = vmatpush1.bf16.msra.mxu0 %v977
    %1021 = vmatprep.subr.bf16.mxu0 0
    %1022 = vmatpush1.bf16.msra.mxu0 %v978
    %1023 = vmatprep.subr.bf16.mxu0 0
    %1024 = vmatpush1.bf16.msra.mxu0 %v979
    %1025 = vmatprep.subr.bf16.mxu0 0
    %1026 = vmatpush1.bf16.msra.mxu0 %v980
    %1027 = vmatprep.subr.bf16.mxu0 0
    %1028 = vmatpush1.bf16.msra.mxu0 %v981
    %1029 = vmatprep.subr.bf16.mxu0 0
    %1030 = vmatpush1.bf16.msra.mxu0 %v982
    %1031 = vmatprep.mubr.bf16.mxu0 %v863
    %1032 = vmatmul.mubr.bf16.gmra.mrb[0].mxu0 %v862
    %v1033 = vpop.f32.mrb[0].mxu0
    %v1034 = vadd.f32 %v901, %v1033
    %v1035 = vpop.f32.mrb[0].mxu0
    %v1036 = vpop.f32.mrb[0].mxu0
    %v1037 = vpop.f32.mrb[0].mxu0
    %1038 = vdwg.mxu0
    %v1039 = vmax.f32 %v1034, 0.0
    %v1040 = vmin.f32 %v1039, 1.0
    %v1041 = vpack.c.bf16 %v1040, %v1040
    %v1042 = vld [vmem:[%s5] sm:$0xf]
    %v1043 = vld [vmem:[%s5 + $0x4] sm:$0xf]
    %v1044 = vld [vmem:[%s5 + $0x8] sm:$0xf]
    %v1045 = vld [vmem:[%s5 + $0xc] sm:$0xf]
    %v1046 = vld [vmem:[%s5 + $0x10] sm:$0xf]
    %v1047 = vld [vmem:[%s5 + $0x14] sm:$0xf]
    %v1048 = vld [vmem:[%s5 + $0x18] sm:$0xf]
    %v1049 = vld [vmem:[%s5 + $0x1c] sm:$0xf]
    %v1050 = vld [vmem:[%s5 + $0x20] sm:$0xf]
    %v1051 = vld [vmem:[%s5 + $0x24] sm:$0xf]
    %v1052 = vld [vmem:[%s5 + $0x28] sm:$0xf]
    %v1053 = vld [vmem:[%s5 + $0x2c] sm:$0xf]
    %v1054 = vld [vmem:[%s5 + $0x30] sm:$0xf]
    %v1055 = vld [vmem:[%s5 + $0x34] sm:$0xf]
    %v1056 = vld [vmem:[%s5 + $0x38] sm:$0xf]
    %v1057 = vld [vmem:[%s5 + $0x3c] sm:$0xf]
    %v1058 = vld [vmem:[%s6] sm:$0x1]
    %v1060 = vlaneseq
    %v1061 = vshrl.u32 %v1060, 7
    %v1062 = vsub.s32 0, %v1061
    %v1063 = vrot.slane %v1058, %v1062
    %v1081 = vunpack.c.l.b16 %v1042
    %v1082 = vunpack.c.l.b16 %v1043
    %v1083 = vunpack.c.l.b16 %v1044
    %v1084 = vunpack.c.l.b16 %v1045
    %v1085 = vunpack.c.l.b16 %v1046
    %v1086 = vunpack.c.l.b16 %v1047
    %v1087 = vunpack.c.l.b16 %v1048
    %v1088 = vunpack.c.l.b16 %v1049
    %v1089 = vunpack.c.l.b16 %v1050
    %v1090 = vunpack.c.l.b16 %v1051
    %v1091 = vunpack.c.l.b16 %v1052
    %v1092 = vunpack.c.l.b16 %v1053
    %v1093 = vunpack.c.l.b16 %v1054
    %v1094 = vunpack.c.l.b16 %v1055
    %v1095 = vunpack.c.l.b16 %v1056
    %v1096 = vunpack.c.l.b16 %v1057
    %v1097 = vpack.c.b16 %v1082, %v1081
    %v1098 = vpack.c.b16 %v1084, %v1083
    %v1099 = vpack.c.b16 %v1086, %v1085
    %v1100 = vpack.c.b16 %v1088, %v1087
    %v1101 = vpack.c.b16 %v1090, %v1089
    %v1102 = vpack.c.b16 %v1092, %v1091
    %v1103 = vpack.c.b16 %v1094, %v1093
    %v1104 = vpack.c.b16 %v1096, %v1095
    %1113 = vmatprep.subr.bf16.mxu0 0
    %1114 = vmatpush1.bf16.msra.mxu0 %v1097
    %1115 = vmatprep.subr.bf16.mxu0 0
    %1116 = vmatpush1.bf16.msra.mxu0 %v1098
    %1117 = vmatprep.subr.bf16.mxu0 0
    %1118 = vmatpush1.bf16.msra.mxu0 %v1099
    %1119 = vmatprep.subr.bf16.mxu0 0
    %1120 = vmatpush1.bf16.msra.mxu0 %v1100
    %1121 = vmatprep.subr.bf16.mxu0 0
    %1122 = vmatpush1.bf16.msra.mxu0 %v1101
    %1123 = vmatprep.subr.bf16.mxu0 0
    %1124 = vmatpush1.bf16.msra.mxu0 %v1102
    %1125 = vmatprep.subr.bf16.mxu0 0
    %1126 = vmatpush1.bf16.msra.mxu0 %v1103
    %1127 = vmatprep.subr.bf16.mxu0 0
    %1128 = vmatpush1.bf16.msra.mxu0 %v1104
    %1129 = vmatprep.subr.bf16.mxu0 0
    %1130 = vmatpush1.bf16.msra.mxu0 0
    %1131 = vmatprep.subr.bf16.mxu0 0
    %1132 = vmatpush1.bf16.msra.mxu0 0
    %1133 = vmatprep.subr.bf16.mxu0 0
    %1134 = vmatpush1.bf16.msra.mxu0 0
    %1135 = vmatprep.subr.bf16.mxu0 0
    %1136 = vmatpush1.bf16.msra.mxu0 0
    %1137 = vmatprep.subr.bf16.mxu0 0
    %1138 = vmatpush1.bf16.msra.mxu0 0
    %1139 = vmatprep.subr.bf16.mxu0 0
    %1140 = vmatpush1.bf16.msra.mxu0 0
    %1141 = vmatprep.subr.bf16.mxu0 0
    %1142 = vmatpush1.bf16.msra.mxu0 0
    %1143 = vmatprep.subr.bf16.mxu0 0
    %1144 = vmatpush1.bf16.msra.mxu0 0
    %1145 = vmatprep.mubr.bf16.mxu0 0
    %1146 = vmatmul.mubr.bf16.gmra.mrb[0].mxu0 %v1041
    %v1147 = vpop.f32.mrb[0].mxu0
    %v1148 = vadd.f32 %v1063, %v1147
    %v1149 = vpop.f32.mrb[0].mxu0
    %v1150 = vpop.f32.mrb[0].mxu0
    %v1151 = vpop.f32.mrb[0].mxu0
    %1152 = vdwg.mxu0
    %v1153 = vmax.f32 %v1148, 0.0
    %v1154 = vmin.f32 %v1153, 1.0
    %v1155 = vpack.c.bf16 %v1154, %v1154
    %v1156 = vld [vmem:[%s7] sm:$0xf]
    %v1157 = vld [vmem:[%s7 + $0x4] sm:$0xf]
    %v1158 = vld [vmem:[%s7 + $0x8] sm:$0xf]
    %v1159 = vld [vmem:[%s7 + $0xc] sm:$0xf]
    %v1160 = vld [vmem:[%s7 + $0x10] sm:$0xf]
    %v1161 = vld [vmem:[%s7 + $0x14] sm:$0xf]
    %v1162 = vld [vmem:[%s7 + $0x18] sm:$0xf]
    %v1163 = vld [vmem:[%s7 + $0x1c] sm:$0xf]
    %v1164 = vld [vmem:[%s8] sm:$0x1]
    %v1166 = vlaneseq
    %v1167 = vshrl.u32 %v1166, 7
    %v1168 = vsub.s32 0, %v1167
    %v1169 = vrot.slane %v1164, %v1168
    %v1179 = vunpack.c.l.b16 %v1156
    %v1180 = vunpack.c.l.b16 %v1157
    %v1181 = vunpack.c.l.b16 %v1158
    %v1182 = vunpack.c.l.b16 %v1159
    %v1183 = vunpack.c.l.b16 %v1160
    %v1184 = vunpack.c.l.b16 %v1161
    %v1185 = vunpack.c.l.b16 %v1162
    %v1186 = vunpack.c.l.b16 %v1163
    %v1187 = vpack.c.b16 %v1180, %v1179
    %v1188 = vpack.c.b16 %v1182, %v1181
    %v1189 = vpack.c.b16 %v1184, %v1183
    %v1190 = vpack.c.b16 %v1186, %v1185
    %vm1195 = vcmask 523264
    %v1197 = vsel %vm1195, %v1155, 0
    %1199 = vmatprep.subr.bf16.mxu0 0
    %1200 = vmatpush1.bf16.msra.mxu0 %v1187
    %1201 = vmatprep.subr.bf16.mxu0 0
    %1202 = vmatpush1.bf16.msra.mxu0 %v1188
    %1203 = vmatprep.subr.bf16.mxu0 0
    %1204 = vmatpush1.bf16.msra.mxu0 %v1189
    %1205 = vmatprep.subr.bf16.mxu0 0
    %1206 = vmatpush1.bf16.msra.mxu0 %v1190
    %1207 = vmatprep.subr.bf16.mxu0 0
    %1208 = vmatpush1.bf16.msra.mxu0 0
    %1209 = vmatprep.subr.bf16.mxu0 0
    %1210 = vmatpush1.bf16.msra.mxu0 0
    %1211 = vmatprep.subr.bf16.mxu0 0
    %1212 = vmatpush1.bf16.msra.mxu0 0
    %1213 = vmatprep.subr.bf16.mxu0 0
    %1214 = vmatpush1.bf16.msra.mxu0 0
    %1215 = vmatprep.subr.bf16.mxu0 0
    %1216 = vmatpush1.bf16.msra.mxu0 0
    %1217 = vmatprep.subr.bf16.mxu0 0
    %1218 = vmatpush1.bf16.msra.mxu0 0
    %1219 = vmatprep.subr.bf16.mxu0 0
    %1220 = vmatpush1.bf16.msra.mxu0 0
    %1221 = vmatprep.subr.bf16.mxu0 0
    %1222 = vmatpush1.bf16.msra.mxu0 0
    %1223 = vmatprep.subr.bf16.mxu0 0
    %1224 = vmatpush1.bf16.msra.mxu0 0
    %1225 = vmatprep.subr.bf16.mxu0 0
    %1226 = vmatpush1.bf16.msra.mxu0 0
    %1227 = vmatprep.subr.bf16.mxu0 0
    %1228 = vmatpush1.bf16.msra.mxu0 0
    %1229 = vmatprep.subr.bf16.mxu0 0
    %1230 = vmatpush1.bf16.msra.mxu0 0
    %1231 = vmatprep.mubr.bf16.mxu0 0
    %1232 = vmatmul.mubr.bf16.gmra.mrb[0].mxu0 %v1197
    %v1233 = vpop.f32.mrb[0].mxu0
    %v1234 = vadd.f32 %v1169, %v1233
    %v1235 = vpop.f32.mrb[0].mxu0
    %v1236 = vpop.f32.mrb[0].mxu0
    %v1237 = vpop.f32.mrb[0].mxu0
    %1238 = vdwg.mxu0
    %1239 = vmax.xlane.f32.xlu0 %v1234
    %v1240 = vpop.xlane.xlu0 %1239
    %v1241 = vsub.f32 %v1234, %v1240
    %v1242 = vmul.f32 %v1241, 1.442695
    %v1243 = vpow.pop %v1242
    %1244 = vadd.xlane.f32.xlu0 %v1243
    %v1245 = vpop.xlane.xlu0 %1244
    %v1246 = vlog2.pop %v1245
    %v1247 = vmul.f32 %v1246, 0.6931472
    %v1248 = vsub.f32 %v1241, %v1247
    %v1249 = vpack.c.bf16 %v1248, %v1248
    %1250 = vst [vmem:[#allocation7] sm:$0xf] %v1249
    // Predicated region
    $region46: #{tpu_custom_call.1} parent=1 // pred_check
      _
    $region47: #{tpu_custom_call.1} parent=1 // pred_check_branch
      %1252 = sbr.rel (0) target = $region49
    $region48: #{tpu_custom_call.1} parent=1 // pred_region
      %s1254 = ssub.s32 64, 64
      %1255 = vsyncadd [#allocation4], %s1254
      %s1257 = sshll.u32 [#allocation7], 4
      %s1258 = int_to_ptr.vmem [resolvable:$true] %s1257
      %1260 = dma.vmem_to_hbm [thread:$0]  %s1258, 64, %s9, [#allocation4]
    $region49: #{tpu_custom_call.1} parent=1 // pred_fallthru
      _
    // Predicated region
    $region50: #{tpu_custom_call.1} parent=1 // pred_check
      _
    $region51: #{tpu_custom_call.1} parent=1 // pred_check_branch
      %1262 = sbr.rel (0) target = $region53
    $region52: #{tpu_custom_call.1} parent=1 // pred_region
      %1263 = dma.done [#allocation4], 64
    $region53: #{tpu_custom_call.1} parent=1 // pred_fallthru
      _
    %1264 = vsyncpa [#allocation3], 1
    %1265 = vsyncpa [#allocation6], 1
    %1266 = vsyncpa [#allocation4], 1

</llo_original>
